<compile_context>
chip_gen: v6e
topology: v6e:2x2x1
jax: 0.10.0
libtpu: 0.0.40
codegen_flags: <defaults>
</compile_context>

<pallas_src>
import jax
import jax.numpy as jnp
from jax.experimental import pallas as pl
from jax.experimental.pallas import tpu as pltpu


EPS = 1e-6


def rmsnorm_kernel(x_ref, o_ref):
    # x_ref / o_ref: (TILE_ROWS, H) blocks resident in VMEM.
    x = x_ref[...].astype(jnp.float32)                    # upcast like torch .to(float32)
    variance = jnp.mean(x * x, axis=-1, keepdims=True)    # mean of squares over hidden
    inv = jax.lax.rsqrt(variance + EPS)                    # EUP rsqrt (free slot)
    o_ref[...] = (x * inv).astype(o_ref.dtype)            # cast back to input dtype


def _sublane_align(dtype):
    # Rows per fully-packed vreg sublane group: 8 for 4-byte, 16 for 2-byte,
    # 32 for 1-byte dtypes.
    itemsize = jnp.dtype(dtype).itemsize
    return {4: 8, 2: 16, 1: 32}.get(itemsize, 8)


def _round_up(x, m):
    return ((x + m - 1) // m) * m


def _choose_tile_rows(R, H, dtype, vmem_budget_bytes):
    align = _sublane_align(dtype)
    itemsize = jnp.dtype(dtype).itemsize
    # Per-row VMEM cost estimate:
    #   in + out blocks, double-buffered by the pipeline: 4 * H * itemsize
    #   f32 intermediates (x, x*x, y):                    ~3 * H * 4
    per_row = H * (4 * itemsize + 3 * 4)
    tile = (vmem_budget_bytes // max(per_row, 1)) // align * align
    tile = max(align, min(tile, 1024))
    # Never larger than the (row-aligned) data itself.
    tile = min(tile, _round_up(R, align))
    return tile


def llama_rms_norm(hidden_states, *, tile_rows=None,
                   vmem_budget_bytes=40 * 1024 * 1024):
    """hidden_states: (..., H). Returns same shape/dtype, RMS-normalized over last dim."""
    orig_shape = hidden_states.shape
    orig_dtype = hidden_states.dtype
    H = orig_shape[-1]
    x2d = hidden_states.reshape(-1, H)
    R = x2d.shape[0]

    if tile_rows is None:
        tile_rows = _choose_tile_rows(R, H, orig_dtype, vmem_budget_bytes)

    itemsize = jnp.dtype(orig_dtype).itemsize
    # Scoped-VMEM limit sized to the real footprint (+50% headroom), never
    # below the 32 MiB v6e/v7x default and never above 48 MiB (v7x has only
    # 64 MiB physical VMEM per TC).
    footprint = tile_rows * H * (4 * itemsize + 3 * 4)
    vmem_limit = int(min(max(int(footprint * 1.5), 32 * 1024 * 1024),
                         48 * 1024 * 1024))

    cost = pl.CostEstimate(
        flops=3 * R * H,            # square, scale, reduce-add ~ O(3*R*H)
        transcendentals=R,          # one rsqrt per row
        bytes_accessed=2 * R * H * itemsize,
    )

    # No host-side padding: the boundary block (if R % tile_rows != 0) is
    # masked by Pallas; out-of-range rows are never written back.
    grid = (pl.cdiv(R, tile_rows),)

    out = pl.pallas_call(
        rmsnorm_kernel,
        out_shape=jax.ShapeDtypeStruct((R, H), orig_dtype),
        grid_spec=pltpu.PrefetchScalarGridSpec(
            num_scalar_prefetch=0,
            grid=grid,
            in_specs=[pl.BlockSpec((tile_rows, H), lambda i: (i, 0))],
            out_specs=pl.BlockSpec((tile_rows, H), lambda i: (i, 0)),
        ),
        compiler_params=pltpu.CompilerParams(
            dimension_semantics=("parallel",),   # row grid is fully independent
            vmem_limit_bytes=vmem_limit,
        ),
        cost_estimate=cost,
    )(x2d)

    return out.reshape(orig_shape)


def rmsnorm_ref(x):
    xf = x.astype(jnp.float32)
    var = jnp.mean(xf * xf, axis=-1, keepdims=True)
    return (xf * jax.lax.rsqrt(var + EPS)).astype(x.dtype)


if __name__ == "__main__":
    key = jax.random.PRNGKey(0)

    # Small shapes consistent with the module's forward: (batch, seq, hidden).
    batch, seq, hidden = 2, 8, 32
    x = jax.random.normal(key, (batch, seq, hidden), dtype=jnp.float32)

    y = llama_rms_norm(x)
    jax.block_until_ready(y)
    y_ref = rmsnorm_ref(x)
    assert y.shape == x.shape and y.dtype == x.dtype
    assert jnp.allclose(y, y_ref, atol=1e-5, rtol=1e-5)

    # Row count not a multiple of the tile / sublane alignment (exercises the
    # pad-free masked boundary-block path).
    x2 = jax.random.normal(jax.random.PRNGKey(1), (3, 5, 32), dtype=jnp.float32)
    y2 = llama_rms_norm(x2)
    jax.block_until_ready(y2)
    assert jnp.allclose(y2, rmsnorm_ref(x2), atol=1e-5, rtol=1e-5)

    # bfloat16 input: upcast-to-f32 math, cast back to bf16 (matches torch).
    x3 = jax.random.normal(jax.random.PRNGKey(2), (2, 8, 32), dtype=jnp.bfloat16)
    y3 = llama_rms_norm(x3)
    jax.block_until_ready(y3)
    assert y3.dtype == jnp.bfloat16
    assert jnp.allclose(y3.astype(jnp.float32),
                        rmsnorm_ref(x3).astype(jnp.float32),
                        atol=2e-2, rtol=2e-2)

    print("KERNEL_OK")
</pallas_src>

<mosaic_0001>
module attributes {stable_mosaic.version = 11 : i64} {
  func.func @rmsnorm_kernel(%arg0: i32, %arg1: memref<16x32xf32, #tpu.memory_space<vmem>>, %arg2: memref<16x32xf32, #tpu.memory_space<vmem>>) attributes {dimension_semantics = [#tpu.dimension_semantics<parallel>], iteration_bounds = array<i64: 1>, scalar_prefetch = 0 : i64, scratch_operands = 0 : i64, tpu.core_type = #tpu.core_type<tc>, window_params = [{transform_indices = @transform_0, window_bounds = array<i64: 16, 32>}, {transform_indices = @transform_1, window_bounds = array<i64: 16, 32>}]} {
    %c0 = arith.constant 0 : index
    %c0_0 = arith.constant 0 : index
    %0 = vector.load %arg1[%c0, %c0_0] : memref<16x32xf32, #tpu.memory_space<vmem>>, vector<16x32xf32>
    %1 = arith.mulf %0, %0 : vector<16x32xf32>
    %cst = arith.constant dense<0.000000e+00> : vector<16xf32>
    %2 = vector.multi_reduction <add>, %1, %cst [1] : vector<16x32xf32> to vector<16xf32>
    %3 = vector.shape_cast %2 : vector<16xf32> to vector<16x1xf32>
    %cst_1 = arith.constant 3.200000e+01 : f32
    %4 = vector.broadcast %cst_1 : f32 to vector<16x1xf32>
    %5 = arith.divf %3, %4 : vector<16x1xf32>
    %cst_2 = arith.constant 9.99999997E-7 : f32
    %6 = vector.broadcast %cst_2 : f32 to vector<16x1xf32>
    %7 = arith.addf %5, %6 : vector<16x1xf32>
    %8 = math.rsqrt %7 : vector<16x1xf32>
    %9 = vector.broadcast %8 : vector<16x1xf32> to vector<16x32xf32>
    %10 = arith.mulf %0, %9 : vector<16x32xf32>
    %c0_3 = arith.constant 0 : index
    %c0_4 = arith.constant 0 : index
    %11 = vector.load %arg2[%c0_3, %c0_4] : memref<16x32xf32, #tpu.memory_space<vmem>>, vector<16x32xf32>
    tpu.vector_store %arg2[%c0_3, %c0_4], %10 {strides = array<i32>} : memref<16x32xf32, #tpu.memory_space<vmem>>, vector<16x32xf32>,
    return
  }
  func.func @transform_0(%arg0: i32) -> (i32, i32) {
    %c0_i32 = arith.constant 0 : i32
    %c0_i32_0 = arith.constant 0 : i32
    return %arg0, %c0_i32 : i32, i32
  }
  func.func @transform_1(%arg0: i32) -> (i32, i32) {
    %c0_i32 = arith.constant 0 : i32
    %c0_i32_0 = arith.constant 0 : i32
    return %arg0, %c0_i32 : i32, i32
  }
}

</mosaic_0001>

<llo_original>
// kernel: tpu_custom_call.1
$region0: #{tpu_custom_call.1}
  #allocation0 [shape = 'u32[]', space=smem, size = 0x4, offset = 0x4, fixed_abs, tag = 'smem constant byte address 0x4 - core index']
  #allocation1 [shape = 'u32[144,128]{1,0:T(1,128)}', space=vmem, size = 0x12000, scoped, tag = 'internal scratch']
  %s0 = inlined_call_operand.hbm [shape: f32[16,32], index: 0, kind: input, shape index: {}]
  %s1 = inlined_call_operand.hbm [shape: f32[16,32], index: 1, kind: output, shape index: {}]
  %s2 = sld [smem:[#allocation0]]
  $region18: #{tpu_custom_call.1} parent=0
    _
  %s4 = ssub.s32 1, %s2
  %s5 = scalar_select 0, %s4, %s2
  $region1: #{tpu_custom_call.1} parent=0
    #allocation2 [shape = 'u8[8192]{0}', space=vmem, size = 0x2000, scoped, tag = 'input window, operand 0, single buffered']
    #allocation3 [shape = 's32[1]{0}', space=sflag, size = 0x4, scoped, tag = 'scoped memory for tpu_custom_call.1']
    #allocation4 [shape = 's32[1]{0}', space=sflag, size = 0x4, scoped, tag = 'scoped memory for tpu_custom_call.1']
    #allocation5 [shape = 'u8[8192]{0}', space=vmem, size = 0x2000, scoped, tag = 'output window, operand 0, single buffered']
    %6 = vsyncpa [#allocation3], 0
    %7 = vsyncpa [#allocation4], 0
    // Predicated region
    $region2: #{tpu_custom_call.1} parent=1 // pred_check
      _
    $region3: #{tpu_custom_call.1} parent=1 // pred_check_branch
      %9 = sbr.rel (0) target = $region5
    $region4: #{tpu_custom_call.1} parent=1 // pred_region
      %s11 = ssub.s32 256, 256
      %12 = vsyncadd [#allocation3], %s11
      %s13 = sshll.u32 [#allocation2], 4
      %s14 = int_to_ptr.vmem [resolvable:$true] %s13
      %19 = dma.hbm_to_vmem [thread:$0]  %s0, 256, %s14, [#allocation3], 128, 128, 8
    $region5: #{tpu_custom_call.1} parent=1 // pred_fallthru
      _
    // Predicated region
    $region6: #{tpu_custom_call.1} parent=1 // pred_check
      _
    $region7: #{tpu_custom_call.1} parent=1 // pred_check_branch
      %21 = sbr.rel (0) target = $region9
    $region8: #{tpu_custom_call.1} parent=1 // pred_region
      %22 = dma.done [#allocation3], 256
    $region9: #{tpu_custom_call.1} parent=1 // pred_fallthru
      _
    %v23 = vld [vmem:[#allocation2] sm:$0xff]
    %v24 = vld [vmem:[#allocation2 + $0x8] sm:$0xff]
    %v25 = vmul.f32 %v23, %v23
    %v26 = vmul.f32 %v24, %v24
    %vm27 = vcmask 261120
    %v28 = vsel %vm27, %v25, 0.0
    %29 = vadd.xlane.f32.xlu0 %v28
    %v30 = vpop.xlane.xlu0 %29
    %v31 = vsel %vm27, %v26, 0.0
    %32 = vadd.xlane.f32.xlu0 %v31
    %v33 = vpop.xlane.xlu0 %32
    %v34 = vrcp.pop 32.0
    %v35 = vmul.f32 %v30, %v34
    %v36 = vmul.f32 %v33, %v34
    %v37 = vadd.f32 %v35, 1e-06
    %v38 = vadd.f32 %v36, 1e-06
    %v39 = vrsqrt.pop %v37
    %v40 = vrsqrt.pop %v38
    %v41 = vmul.f32 %v23, %v39
    %v42 = vmul.f32 %v24, %v40
    %43 = vst.msk [vmem:[#allocation5] sm:$0xff] %vm27, %v41
    %44 = vst.msk [vmem:[#allocation5 + $0x8] sm:$0xff] %vm27, %v42
    // Predicated region
    $region10: #{tpu_custom_call.1} parent=1 // pred_check
      _
    $region11: #{tpu_custom_call.1} parent=1 // pred_check_branch
      %46 = sbr.rel (0) target = $region13
    $region12: #{tpu_custom_call.1} parent=1 // pred_region
      %s48 = ssub.s32 256, 256
      %49 = vsyncadd [#allocation4], %s48
      %s50 = sshll.u32 [#allocation5], 4
      %s51 = int_to_ptr.vmem [resolvable:$true] %s50
      %56 = dma.vmem_to_hbm [thread:$0]  %s51, 256, %s1, [#allocation4], 128, 128, 8
    $region13: #{tpu_custom_call.1} parent=1 // pred_fallthru
      _
    // Predicated region
    $region14: #{tpu_custom_call.1} parent=1 // pred_check
      _
    $region15: #{tpu_custom_call.1} parent=1 // pred_check_branch
      %58 = sbr.rel (0) target = $region17
    $region16: #{tpu_custom_call.1} parent=1 // pred_region
      %59 = dma.done [#allocation4], 256
    $region17: #{tpu_custom_call.1} parent=1 // pred_fallthru
      _
    %60 = vsyncpa [#allocation3], 1
    %61 = vsyncpa [#allocation4], 1

</llo_original>
